<compile_context>
chip_gen: v6e
topology: v6e:2x2x1
jax: 0.10.0
libtpu: 0.0.40
codegen_flags: <defaults>
</compile_context>

<pallas_src>
import jax
import jax.numpy as jnp
from jax.experimental import pallas as pl
from jax.experimental.pallas import tpu as pltpu


def _make_pool_kernel(tn, mask_nodes, use_scratch):
    """Build the kernel body for fixed node-tile size / masking / scratch config."""

    def kernel(nn_ref, batch_ref, x_ref, o_ref, *scratch):
        # nn_ref   : SMEM (1,) int32  -- true node count N (scalar prefetch)
        # batch_ref: [1, TN] int32    -- graph id per node (ragged tail = garbage)
        # x_ref    : [TN, TF]         -- node features     (ragged tail = garbage)
        # o_ref    : [Bp, TF]         -- output block (resident across node axis)
        acc_ref = scratch[0] if use_scratch else o_ref
        k = pl.program_id(1)  # node-tile index (reduction axis, innermost)

        @pl.when(k == 0)
        def _():
            acc_ref[...] = jnp.zeros_like(acc_ref)

        x = x_ref[...]  # [TN, TF], native dtype
        if mask_nodes:
            # Zero rows past the true node count (select, so garbage/NaN is killed).
            node_idx = k * tn + jax.lax.broadcasted_iota(jnp.int32, (tn, 1), 0)
            x = jnp.where(node_idx < nn_ref[0], x, jnp.zeros_like(x))

        batch = batch_ref[...]  # [1, TN]
        graph_ids = jax.lax.broadcasted_iota(jnp.int32, (acc_ref.shape[0], 1), 0)
        onehot = (graph_ids == batch).astype(x.dtype)  # [Bp, TN], 0/1 exact in bf16/f32

        # Segment sum as an MXU matmul; accumulate in f32.
        acc_ref[...] += jnp.dot(onehot, x, preferred_element_type=jnp.float32)

        if use_scratch:
            @pl.when(k == pl.num_programs(1) - 1)
            def _():
                o_ref[...] = acc_ref[...].astype(o_ref.dtype)

    return kernel


def global_add_pool_pallas(x, batch, num_graphs, *,
                           tile_nodes=1024, tile_feat=1024,
                           vmem_limit_bytes=48 << 20):
    """x: [N, F] float, batch: [N] int -> [num_graphs, F] (sum-pool per graph)."""
    assert x.ndim == 2 and batch.ndim == 1 and x.shape[0] == batch.shape[0]
    # One-hot matmul formulation targets the small-graph-count regime.
    assert num_graphs <= 1024, (
        "TODO(synk): sorted-batch streaming path needed for large num_graphs")

    n_nodes, n_feat = x.shape
    out_dtype = x.dtype
    itemsize = jnp.dtype(x.dtype).itemsize

    # ---- Feature tile: must divide F exactly (no feature padding of x). -------
    if n_feat % 128 == 0:
        limit = min(tile_feat, n_feat)
        if n_feat >= 256:
            # Guarantee >=2 feature blocks so the "parallel" axis can shard
            # across the two TensorCores on v7x (harmless on v5e/v6e).
            limit = min(limit, n_feat // 2)
        limit = max(limit, 128)
        tf = 128
        for cand in range(128, limit + 1, 128):
            if n_feat % cand == 0:
                tf = cand
    else:
        # Full-dim block is allowed when the lane dim is not 128-aligned.
        tf = n_feat
    num_feat_tiles = pl.cdiv(n_feat, tf)

    # ---- Node tile: multiple of 128; keep the x block <= ~8 MiB (double-buffered
    #      by the pipeline => <= ~16 MiB of VMEM for x). ------------------------
    tn = min(tile_nodes, pl.cdiv(n_nodes, 128) * 128)
    tn = max(128, (tn // 128) * 128)
    max_block_bytes = 8 << 20
    while tn > 128 and tn * tf * itemsize > max_block_bytes:
        tn -= 128
    num_node_tiles = pl.cdiv(n_nodes, tn)
    mask_nodes = (n_nodes % tn) != 0  # ragged last node tile -> in-kernel mask

    # ---- Graph rows padded to the sublane packing of the output dtype. -------
    sub = {1: 32, 2: 16}.get(jnp.dtype(out_dtype).itemsize, 8)
    bp = max(sub, pl.cdiv(num_graphs, sub) * sub)

    # f32 outputs accumulate directly in the resident output block (no scratch).
    use_scratch = out_dtype != jnp.float32

    batch2d = batch.astype(jnp.int32).reshape(1, n_nodes)
    n_smem = jnp.array([n_nodes], dtype=jnp.int32)  # scalar-prefetched true N

    kernel = _make_pool_kernel(tn, mask_nodes, use_scratch)

    out = pl.pallas_call(
        kernel,
        out_shape=jax.ShapeDtypeStruct((bp, n_feat), out_dtype),
        grid_spec=pltpu.PrefetchScalarGridSpec(
            num_scalar_prefetch=1,
            grid=(num_feat_tiles, num_node_tiles),
            in_specs=[
                pl.BlockSpec((1, tn), lambda j, k, nn: (0, k)),    # batch ids
                pl.BlockSpec((tn, tf), lambda j, k, nn: (k, j)),   # node features
            ],
            out_specs=pl.BlockSpec((bp, tf), lambda j, k, nn: (0, j)),
            scratch_shapes=((pltpu.VMEM((bp, tf), jnp.float32),)
                            if use_scratch else ()),
        ),
        compiler_params=pltpu.CompilerParams(
            dimension_semantics=("parallel", "arbitrary"),
            vmem_limit_bytes=vmem_limit_bytes,
        ),
    )(n_smem, batch2d, x)

    return out[:num_graphs]


if __name__ == "__main__":
    key = jax.random.PRNGKey(0)

    # --- Test 1: f32, non-tile-aligned N and F. Exercises: ragged node tile with
    #     in-kernel masking, full-dim feature block (F=160 not 128-aligned),
    #     multi-step reduction accumulating directly into the f32 output block.
    N, F, B = 200, 160, 6
    kx, kb = jax.random.split(key)
    x = jax.random.normal(kx, (N, F), dtype=jnp.float32)
    batch = jnp.sort(jax.random.randint(kb, (N,), 0, B)).astype(jnp.int32)

    out = jax.block_until_ready(global_add_pool_pallas(x, batch, B, tile_nodes=128))
    ref = jax.ops.segment_sum(x, batch, num_segments=B)
    assert out.shape == (B, F) and out.dtype == jnp.float32
    assert jnp.allclose(out, ref, atol=1e-4, rtol=1e-4), "f32 mismatch vs segment_sum"

    # --- Test 2: bf16, 128-aligned shapes. Exercises: two feature tiles on the
    #     "parallel" axis, f32 scratch accumulator with final downcast, no mask.
    N2, F2, B2 = 384, 256, 5
    kx2, kb2 = jax.random.split(jax.random.PRNGKey(1))
    x2 = jax.random.normal(kx2, (N2, F2), dtype=jnp.float32).astype(jnp.bfloat16)
    batch2 = jnp.sort(jax.random.randint(kb2, (N2,), 0, B2)).astype(jnp.int32)

    out2 = jax.block_until_ready(
        global_add_pool_pallas(x2, batch2, B2, tile_nodes=128, tile_feat=128))
    ref2 = jax.ops.segment_sum(x2.astype(jnp.float32), batch2, num_segments=B2)
    assert out2.shape == (B2, F2) and out2.dtype == jnp.bfloat16
    assert jnp.allclose(out2.astype(jnp.float32), ref2, atol=5e-1, rtol=2e-2), \
        "bf16 mismatch vs segment_sum"

    print("KERNEL_OK")
</pallas_src>

<mosaic_0001>
module attributes {stable_mosaic.version = 11 : i64} {
  func.func @kernel(%arg0: i32, %arg1: i32, %arg2: memref<1xi32, #tpu.memory_space<smem>>, %arg3: memref<1x128xi32, #tpu.memory_space<vmem>>, %arg4: memref<128x160xf32, #tpu.memory_space<vmem>>, %arg5: memref<8x160xf32, #tpu.memory_space<vmem>>) attributes {dimension_semantics = [#tpu.dimension_semantics<parallel>, #tpu.dimension_semantics<arbitrary>], iteration_bounds = array<i64: 1, 2>, scalar_prefetch = 1 : i64, scratch_operands = 0 : i64, tpu.core_type = #tpu.core_type<tc>, window_params = [{transform_indices = @transform_0, window_bounds = array<i64: 1, 128>}, {transform_indices = @transform_1, window_bounds = array<i64: 128, 160>}, {transform_indices = @transform_2, window_bounds = array<i64: 8, 160>}]} {
    %c0_i32 = arith.constant 0 : i32
    %0 = arith.cmpi eq, %arg1, %c0_i32 : i32
    %1 = arith.extui %0 : i1 to i32
    %c0_i32_0 = arith.constant 0 : i32
    %2 = arith.cmpi ne, %1, %c0_i32_0 : i32
    scf.if %2 {
      %cst_10 = arith.constant 0.000000e+00 : f32
      %26 = vector.broadcast %cst_10 : f32 to vector<8x160xf32>
      %c0_11 = arith.constant 0 : index
      %c0_12 = arith.constant 0 : index
      %27 = vector.load %arg5[%c0_11, %c0_12] : memref<8x160xf32, #tpu.memory_space<vmem>>, vector<8x160xf32>
      tpu.vector_store %arg5[%c0_11, %c0_12], %26 {strides = array<i32>} : memref<8x160xf32, #tpu.memory_space<vmem>>, vector<8x160xf32>,
    } else {
    }
    %c0 = arith.constant 0 : index
    %c0_1 = arith.constant 0 : index
    %3 = vector.load %arg4[%c0, %c0_1] : memref<128x160xf32, #tpu.memory_space<vmem>>, vector<128x160xf32>
    %c128_i32 = arith.constant 128 : i32
    %4 = arith.muli %arg1, %c128_i32 : i32
    %5 = tpu.iota {dimensions = array<i32: 0>} : vector<128x1xi32>
    %6 = vector.broadcast %4 : i32 to vector<128x1xi32>
    %7 = arith.addi %6, %5 : vector<128x1xi32>
    %c0_2 = arith.constant 0 : index
    %8 = memref.load %arg2[%c0_2] : memref<1xi32, #tpu.memory_space<smem>>
    %9 = vector.broadcast %8 : i32 to vector<128x1xi32>
    %10 = arith.cmpi slt, %7, %9 : vector<128x1xi32>
    %cst = arith.constant 0.000000e+00 : f32
    %11 = vector.broadcast %cst : f32 to vector<128x160xf32>
    %12 = vector.shape_cast %10 : vector<128x1xi1> to vector<128x1xi1>
    %13 = vector.broadcast %12 : vector<128x1xi1> to vector<128x160xi1>
    %14 = arith.select %13, %3, %11 : vector<128x160xi1>, vector<128x160xf32>
    %c0_3 = arith.constant 0 : index
    %c0_4 = arith.constant 0 : index
    %15 = vector.load %arg3[%c0_3, %c0_4] : memref<1x128xi32, #tpu.memory_space<vmem>>, vector<1x128xi32>
    %16 = tpu.iota {dimensions = array<i32: 0>} : vector<8x1xi32>
    %17 = vector.broadcast %16 : vector<8x1xi32> to vector<8x128xi32>
    %18 = vector.broadcast %15 : vector<1x128xi32> to vector<8x128xi32>
    %19 = arith.cmpi eq, %17, %18 : vector<8x128xi32>
    %20 = arith.extui %19 : vector<8x128xi1> to vector<8x128xi32>
    %21 = arith.sitofp %20 : vector<8x128xi32> to vector<8x128xf32>
    %c0_5 = arith.constant 0 : index
    %c0_6 = arith.constant 0 : index
    %22 = vector.load %arg5[%c0_5, %c0_6] : memref<8x160xf32, #tpu.memory_space<vmem>>, vector<8x160xf32>
    %cst_7 = arith.constant dense<0.000000e+00> : vector<8x160xf32>
    %23 = tpu.matmul %21, %14, %cst_7 {dimension_numbers = #tpu.dot_dimension_numbers<[1], [0], [0], [1], [0, 0, 1, 1], [], []>} : vector<8x128xf32>, vector<128x160xf32>, vector<8x160xf32> -> vector<8x160xf32>
    %24 = arith.addf %22, %23 : vector<8x160xf32>
    %c0_8 = arith.constant 0 : index
    %c0_9 = arith.constant 0 : index
    %25 = vector.load %arg5[%c0_8, %c0_9] : memref<8x160xf32, #tpu.memory_space<vmem>>, vector<8x160xf32>
    tpu.vector_store %arg5[%c0_8, %c0_9], %24 {strides = array<i32>} : memref<8x160xf32, #tpu.memory_space<vmem>>, vector<8x160xf32>,
    return
  }
  func.func @transform_0(%arg0: i32, %arg1: i32, %arg2: memref<1xi32, #tpu.memory_space<smem>>) -> (i32, i32) {
    %c0_i32 = arith.constant 0 : i32
    %c0_i32_0 = arith.constant 0 : i32
    return %c0_i32, %arg1 : i32, i32
  }
  func.func @transform_1(%arg0: i32, %arg1: i32, %arg2: memref<1xi32, #tpu.memory_space<smem>>) -> (i32, i32) {
    %c0_i32 = arith.constant 0 : i32
    return %arg1, %arg0 : i32, i32
  }
  func.func @transform_2(%arg0: i32, %arg1: i32, %arg2: memref<1xi32, #tpu.memory_space<smem>>) -> (i32, i32) {
    %c0_i32 = arith.constant 0 : i32
    %c0_i32_0 = arith.constant 0 : i32
    return %c0_i32, %arg0 : i32, i32
  }
}

</mosaic_0001>

<llo_original>
// kernel: tpu_custom_call.1
$region0: #{tpu_custom_call.1}
  #allocation0 [shape = 'u32[]', space=smem, size = 0x4, offset = 0x4, fixed_abs, tag = 'smem constant byte address 0x4 - core index']
  #allocation1 [shape = 'u32[144,128]{1,0:T(1,128)}', space=vmem, size = 0x12000, scoped, tag = 'internal scratch']
  #allocation2 [shape = 's32[1]{0}', space=sflag, size = 0x4, scoped, tag = 'scoped memory for tpu_custom_call.1']
  #allocation3 [shape = 's32[1]{0:T(128)S(6)}', space=smem, size = 0x200, scoped, tag = 'prefetched SMEM operand 0']
  %s0 = inlined_call_operand.<no memory space> [shape: s32[1], index: 0, kind: input, shape index: {}]
  %s1 = inlined_call_operand.vmem [shape: s32[1,200], index: 1, kind: input, shape index: {}]
  %s2 = inlined_call_operand.vmem [shape: f32[200,160], index: 2, kind: input, shape index: {}]
  %s3 = inlined_call_operand.hbm [shape: f32[8,160], index: 3, kind: output, shape index: {}]
  %s4 = sld [smem:[#allocation0]]
  $region45: #{tpu_custom_call.1} parent=0
    _
  %s6 = ssub.s32 1, %s4
  %s7 = scalar_select 0, %s6, %s4
  %8 = sst [smem:[#allocation3]] %s0
  $region1: #{tpu_custom_call.1} parent=0
    #allocation4 [shape = 'u8[8192]{0}', space=vmem, size = 0x2000, scoped, tag = 'output window, operand 0, single buffered']
    #allocation5 [shape = 's32[2]{0}', space=sflag, size = 0x8, scoped, tag = 'scoped memory for tpu_custom_call.1']
    %9 = vsyncpa [#allocation5], 0
    loop: start=0, step=1, limit=4
    $region2: #{tpu_custom_call.1} parent=1 // loop_pre_header
      _
    $region3: #{tpu_custom_call.1} parent=1 // loop_header
      %s11 = sphi 0, %s15
      %p12 = scmp.ge.s32.totalorder %s11, 4
      %s18 = sphi 0, %s30
      %s19 = sphi 0, %s26
      %s20 = sphi 0, %s18
      %s21 = sphi 0, %s19
      %s22 = sphi 0, %s20
      %s23 = sphi 0, %s21
      %s33 = sphi 0, %s35
      %s36 = sphi 0, %s33
      %s37 = sphi 0, %s36
      %s53 = sphi 0, %s37
      %s61 = sphi 0, %s63
      %s64 = sphi 0, %s61
      %s65 = sphi 0, %s64
      %s81 = sphi 0, %s65
      %s87 = sphi 0, %s89
      %s90 = sphi 0, %s87
      %s91 = sphi 0, %s90
      %s107 = sphi 0, %s91
    $region4: #{tpu_custom_call.1} parent=1 // loop_header_branch
      %14 = sbr.rel (%p12) target = $region8
    $region5: #{tpu_custom_call.1} parent=1 // loop_body
      %s16 = ssub.s32 %s11, 1
      %s17 = ssub.s32 %s11, 2
      %s24 = sadd.s32 1, %s19
      %p25 = scmp.ge.s32.totalorder %s24, 2
      %s26 = scalar_select %p25, 0, %s24
      %s27 = sadd.s32 1, %s18
      %s28 = scalar_select %p25, %s27, %s18
      %p29 = scmp.ge.s32.totalorder %s28, 1
      %s30 = scalar_select %p29, 0, %s28
      %s31 = ssub.s32 %s19, %s26
      %p32 = scmp.eq.s32.totalorder %s31, 0
      %s34 = sadd.s32 %s33, 1
      %s35 = scalar_select %p32, %s33, %s34
      %p38 = pneg %p32
      %p39 = scmp.eq.s32.totalorder %s11, 1
      %p40 = por %p38, %p39
      %p41 = scmp.ne.s32.totalorder %s33, %s36
      %p42 = scmp.eq.s32.totalorder %s11, 0
      %p43 = por %p41, %p42
      %p44 = scmp.ne.s32.totalorder %s33, %s36
      %p45 = scmp.eq.s32.totalorder %s16, 1
      %p46 = por %p44, %p45
      %p47 = scmp.ne.s32.totalorder %s36, %s37
      %p48 = scmp.eq.s32.totalorder %s16, 0
      %p49 = por %p47, %p48
      %p50 = scmp.ne.s32.totalorder %s36, %s37
      %p51 = scmp.eq.s32.totalorder %s17, 1
      %p52 = por %p50, %p51
      %p54 = scmp.ne.s32.totalorder %s37, %s53
      %p55 = scmp.eq.s32.totalorder %s17, 0
      %p56 = por %p54, %p55
      %s57 = ssub.s32 %s19, %s26
      %s58 = ssub.s32 %s18, %s30
      %s59 = sor.u32 %s57, %s58
      %p60 = scmp.eq.s32.totalorder %s59, 0
      %s62 = sadd.s32 %s61, 1
      %s63 = scalar_select %p60, %s61, %s62
      %p66 = pneg %p60
      %p67 = scmp.eq.s32.totalorder %s11, 1
      %p68 = por %p66, %p67
      %p69 = scmp.ne.s32.totalorder %s61, %s64
      %p70 = scmp.eq.s32.totalorder %s11, 0
      %p71 = por %p69, %p70
      %p72 = scmp.ne.s32.totalorder %s61, %s64
      %p73 = scmp.eq.s32.totalorder %s16, 1
      %p74 = por %p72, %p73
      %p75 = scmp.ne.s32.totalorder %s64, %s65
      %p76 = scmp.eq.s32.totalorder %s16, 0
      %p77 = por %p75, %p76
      %p78 = scmp.ne.s32.totalorder %s64, %s65
      %p79 = scmp.eq.s32.totalorder %s17, 1
      %p80 = por %p78, %p79
      %p82 = scmp.ne.s32.totalorder %s65, %s81
      %p83 = scmp.eq.s32.totalorder %s17, 0
      %p84 = por %p82, %p83
      %s85 = ssub.s32 %s18, %s30
      %p86 = scmp.eq.s32.totalorder %s85, 0
      %s88 = sadd.s32 %s87, 1
      %s89 = scalar_select %p86, %s87, %s88
      %p92 = pneg %p86
      %p93 = scmp.eq.s32.totalorder %s11, 1
      %p94 = por %p92, %p93
      %p95 = scmp.ne.s32.totalorder %s87, %s90
      %p96 = scmp.eq.s32.totalorder %s11, 0
      %p97 = por %p95, %p96
      %p98 = scmp.ne.s32.totalorder %s87, %s90
      %p99 = scmp.eq.s32.totalorder %s16, 1
      %p100 = por %p98, %p99
      %p101 = scmp.ne.s32.totalorder %s90, %s91
      %p102 = scmp.eq.s32.totalorder %s16, 0
      %p103 = por %p101, %p102
      %p104 = scmp.ne.s32.totalorder %s90, %s91
      %p105 = scmp.eq.s32.totalorder %s17, 1
      %p106 = por %p104, %p105
      %p108 = scmp.ne.s32.totalorder %s91, %s107
      %p109 = scmp.eq.s32.totalorder %s17, 0
      %p110 = por %p108, %p109
      %p111 = scmp.le.s32.totalorder 1, %s11
      %p112 = scmp.lt.s32.totalorder %s11, 3
      %p113 = pnand %p111, %p112
      %p114 = pneg %p113
      // Predicated region
      $region9: #{tpu_custom_call.1} parent=5 // pred_check
        _
      $region10: #{tpu_custom_call.1} parent=5 // pred_check_branch
        %116 = sbr.rel (%p113) target = $region12
      $region11: #{tpu_custom_call.1} parent=5 // pred_region
        %s117 = ssub.s32 %s11, 1
      $region12: #{tpu_custom_call.1} parent=5 // pred_fallthru
        _
      %p118 = scmp.lt.s32.totalorder %s11, 2
      // Predicated region
      $region13: #{tpu_custom_call.1} parent=5 // pred_check
        %p119 = pneg %p118
      $region14: #{tpu_custom_call.1} parent=5 // pred_check_branch
        %121 = sbr.rel (%p119) target = $region16
      $region15: #{tpu_custom_call.1} parent=5 // pred_region
        // Predicated region
        $region17: #{tpu_custom_call.1} parent=15 // pred_check
          %p122 = pneg %p43
        $region18: #{tpu_custom_call.1} parent=15 // pred_check_branch
          %124 = sbr.rel (%p122) target = $region20
        $region19: #{tpu_custom_call.1} parent=15 // pred_region
          %p125 = scmp.lt.s32.totalorder %s19, 1
          %s126 = scalar_select %p125, %s19, 1
          %s127 = scalar_lea.vmem %s1, %s126
        $region20: #{tpu_custom_call.1} parent=15 // pred_fallthru
          _
        // Predicated region
        $region21: #{tpu_custom_call.1} parent=15 // pred_check
          %p128 = pneg %p71
        $region22: #{tpu_custom_call.1} parent=15 // pred_check_branch
          %130 = sbr.rel (%p128) target = $region24
        $region23: #{tpu_custom_call.1} parent=15 // pred_region
          %s131 = smul.u32 16, %s19
          %s132 = smul.u32 2, %s18
          %s133 = ssub.s32 25, %s131
          %p134 = scmp.lt.s32.totalorder %s133, 16
          %s135 = scalar_select %p134, %s133, 16
          %s136 = smul.u32 128, %s135
          %s137 = smul.u32 %s136, 2
          %p138 = scmp.lt.s32.totalorder %s131, 24
          %s139 = scalar_select %p138, %s131, 24
          %p140 = scmp.lt.s32.totalorder %s132, 1
          %s141 = scalar_select %p140, %s132, 1
          %s142 = smul.addr %s139, 2
          %s143 = sadd.s32 %s141, %s142
          %s144 = smul.addr %s143, 8
          %s145 = scalar_lea.vmem %s2, %s144
          %s146 = smul.u32 16, %s19
          %s147 = smul.u32 2, %s18
          %s148 = ssub.s32 25, %s146
          %p149 = scmp.lt.s32.totalorder %s148, 16
          %s150 = scalar_select %p149, %s148, 16
          %s151 = smul.u32 128, %s150
          %s152 = smul.u32 %s151, 2
        $region24: #{tpu_custom_call.1} parent=15 // pred_fallthru
          _
      $region16: #{tpu_custom_call.1} parent=5 // pred_fallthru
        _
      %p153 = scmp.le.s32.totalorder 1, %s11
      %p154 = scmp.lt.s32.totalorder %s11, 3
      %p155 = pnand %p153, %p154
      %p156 = pneg %p155
      // Predicated region
      $region25: #{tpu_custom_call.1} parent=5 // pred_check
        _
      $region26: #{tpu_custom_call.1} parent=5 // pred_check_branch
        %158 = sbr.rel (%p155) target = $region28
      $region27: #{tpu_custom_call.1} parent=5 // pred_region
        %s159 = ssub.s32 %s11, 1
        %p160 = scmp.lt.s32.totalorder %s21, 1
        %s161 = scalar_select %p160, %s21, 1
        %s162 = scalar_lea.vmem %s1, %s161
        %p163 = pneg %p49
        %p164 = pneg %p46
        %s165 = smul.u32 16, %s21
        %s166 = smul.u32 2, %s20
        %s167 = ssub.s32 25, %s165
        %p168 = scmp.lt.s32.totalorder %s167, 16
        %s169 = scalar_select %p168, %s167, 16
        %s170 = smul.u32 128, %s169
        %s171 = smul.u32 %s170, 2
        %p172 = scmp.lt.s32.totalorder %s165, 24
        %s173 = scalar_select %p172, %s165, 24
        %p174 = scmp.lt.s32.totalorder %s166, 1
        %s175 = scalar_select %p174, %s166, 1
        %s176 = smul.addr %s173, 2
        %s177 = sadd.s32 %s175, %s176
        %s178 = smul.addr %s177, 8
        %s179 = scalar_lea.vmem %s2, %s178
        %p180 = pneg %p77
        %p181 = pneg %p74
        %p182 = pneg %p103
        %p183 = pneg %p100
        %p184 = scmp.lt.s32.totalorder %s21, 1
        %s185 = scalar_select %p184, %s21, 1
        %s186 = scalar_lea.vmem %s1, %s185
        %s187 = smul.u32 16, %s21
        %s188 = smul.u32 2, %s20
        %s189 = ssub.s32 25, %s187
        %p190 = scmp.lt.s32.totalorder %s189, 16
        %s191 = scalar_select %p190, %s189, 16
        %s192 = smul.u32 128, %s191
        %s193 = smul.u32 %s192, 2
        %p194 = scmp.lt.s32.totalorder %s187, 24
        %s195 = scalar_select %p194, %s187, 24
        %p196 = scmp.lt.s32.totalorder %s188, 1
        %s197 = scalar_select %p196, %s188, 1
        %s198 = smul.addr %s195, 2
        %s199 = sadd.s32 %s197, %s198
        %s200 = smul.addr %s199, 8
        %s201 = scalar_lea.vmem %s2, %s200
        %s202 = smul.u32 16, %s21
        %s203 = smul.u32 2, %s20
        %s204 = ssub.s32 25, %s202
        %p205 = scmp.lt.s32.totalorder %s204, 16
        %s206 = scalar_select %p205, %s204, 16
        %s207 = smul.u32 128, %s206
        %s208 = smul.u32 %s207, 2
        %s209 = smul.u32 2, %s20
        %p210 = scmp.eq.s32.totalorder %s21, 0
        // Predicated region
        $region29: #{tpu_custom_call.1} parent=27 // pred_check
          %p211 = pneg %p210
        $region30: #{tpu_custom_call.1} parent=27 // pred_check_branch
          %213 = sbr.rel (%p211) target = $region32
        $region31: #{tpu_custom_call.1} parent=27 // pred_region
          %214 = vst [vmem:[#allocation4] sm:$0xff] 0.0
          %vm215 = vcmask 261120
          %216 = vst.msk [vmem:[#allocation4 + $0x8] sm:$0xff] %vm215, 0.0
        $region32: #{tpu_custom_call.1} parent=27 // pred_fallthru
          _
        %v217 = vld [vmem:[%s201] sm:$0xff]
        %v218 = vld [vmem:[%s201 + $0x8] sm:$0xff]
        %v219 = vld [vmem:[%s201 + $0x10] sm:$0xff]
        %v220 = vld [vmem:[%s201 + $0x18] sm:$0xff]
        %v221 = vld [vmem:[%s201 + $0x20] sm:$0xff]
        %v222 = vld [vmem:[%s201 + $0x28] sm:$0xff]
        %v223 = vld [vmem:[%s201 + $0x30] sm:$0xff]
        %v224 = vld [vmem:[%s201 + $0x38] sm:$0xff]
        %v225 = vld [vmem:[%s201 + $0x40] sm:$0xff]
        %v226 = vld [vmem:[%s201 + $0x48] sm:$0xff]
        %v227 = vld [vmem:[%s201 + $0x50] sm:$0xff]
        %v228 = vld [vmem:[%s201 + $0x58] sm:$0xff]
        %v229 = vld [vmem:[%s201 + $0x60] sm:$0xff]
        %v230 = vld [vmem:[%s201 + $0x68] sm:$0xff]
        %v231 = vld [vmem:[%s201 + $0x70] sm:$0xff]
        %v232 = vld [vmem:[%s201 + $0x78] sm:$0xff]
        %v233 = vld [vmem:[%s201 + $0x80] sm:$0xff]
        %v234 = vld [vmem:[%s201 + $0x88] sm:$0xff]
        %v235 = vld [vmem:[%s201 + $0x90] sm:$0xff]
        %v236 = vld [vmem:[%s201 + $0x98] sm:$0xff]
        %v237 = vld [vmem:[%s201 + $0xa0] sm:$0xff]
        %v238 = vld [vmem:[%s201 + $0xa8] sm:$0xff]
        %v239 = vld [vmem:[%s201 + $0xb0] sm:$0xff]
        %v240 = vld [vmem:[%s201 + $0xb8] sm:$0xff]
        %v241 = vld [vmem:[%s201 + $0xc0] sm:$0xff]
        %v242 = vld [vmem:[%s201 + $0xc8] sm:$0xff]
        %v243 = vld [vmem:[%s201 + $0xd0] sm:$0xff]
        %v244 = vld [vmem:[%s201 + $0xd8] sm:$0xff]
        %v245 = vld [vmem:[%s201 + $0xe0] sm:$0xff]
        %v246 = vld [vmem:[%s201 + $0xe8] sm:$0xff]
        %v247 = vld [vmem:[%s201 + $0xf0] sm:$0xff]
        %v248 = vld [vmem:[%s201 + $0xf8] sm:$0xff]
        %s249 = smul.u32 %s21, 128
        %v250 = vlaneseq
        %v251 = vshrl.u32 %v250, 7
        %v252 = vadd.s32 %v251, 8
        %v253 = vadd.s32 %v251, 16
        %v254 = vadd.s32 %v251, 24
        %v255 = vadd.s32 %v251, 32
        %v256 = vadd.s32 %v251, 40
        %v257 = vadd.s32 %v251, 48
        %v258 = vadd.s32 %v251, 56
        %v259 = vadd.s32 %v251, 64
        %v260 = vadd.s32 %v251, 72
        %v261 = vadd.s32 %v251, 80
        %v262 = vadd.s32 %v251, 88
        %v263 = vadd.s32 %v251, 96
        %v264 = vadd.s32 %v251, 104
        %v265 = vadd.s32 %v251, 112
        %v266 = vadd.s32 %v251, 120
        %v267 = vstv %s249
        %v268 = vadd.s32 %v267, %v251
        %v269 = vadd.s32 %v267, %v252
        %v270 = vadd.s32 %v267, %v253
        %v271 = vadd.s32 %v267, %v254
        %v272 = vadd.s32 %v267, %v255
        %v273 = vadd.s32 %v267, %v256
        %v274 = vadd.s32 %v267, %v257
        %v275 = vadd.s32 %v267, %v258
        %v276 = vadd.s32 %v267, %v259
        %v277 = vadd.s32 %v267, %v260
        %v278 = vadd.s32 %v267, %v261
        %v279 = vadd.s32 %v267, %v262
        %v280 = vadd.s32 %v267, %v263
        %v281 = vadd.s32 %v267, %v264
        %v282 = vadd.s32 %v267, %v265
        %v283 = vadd.s32 %v267, %v266
        %s284 = sld [smem:[#allocation3]]
        %v285 = vstv %s284
        %vm286 = vcmp.lt.s32.totalorder %v268, %v285
        %vm287 = vcmp.lt.s32.totalorder %v269, %v285
        %vm288 = vcmp.lt.s32.totalorder %v270, %v285
        %vm289 = vcmp.lt.s32.totalorder %v271, %v285
        %vm290 = vcmp.lt.s32.totalorder %v272, %v285
        %vm291 = vcmp.lt.s32.totalorder %v273, %v285
        %vm292 = vcmp.lt.s32.totalorder %v274, %v285
        %vm293 = vcmp.lt.s32.totalorder %v275, %v285
        %vm294 = vcmp.lt.s32.totalorder %v276, %v285
        %vm295 = vcmp.lt.s32.totalorder %v277, %v285
        %vm296 = vcmp.lt.s32.totalorder %v278, %v285
        %vm297 = vcmp.lt.s32.totalorder %v279, %v285
        %vm298 = vcmp.lt.s32.totalorder %v280, %v285
        %vm299 = vcmp.lt.s32.totalorder %v281, %v285
        %vm300 = vcmp.lt.s32.totalorder %v282, %v285
        %vm301 = vcmp.lt.s32.totalorder %v283, %v285
        %v302 = vsel %vm286, 1, 0
        %v303 = vsel %vm287, 1, 0
        %v304 = vsel %vm288, 1, 0
        %v305 = vsel %vm289, 1, 0
        %v306 = vsel %vm290, 1, 0
        %v307 = vsel %vm291, 1, 0
        %v308 = vsel %vm292, 1, 0
        %v309 = vsel %vm293, 1, 0
        %v310 = vsel %vm294, 1, 0
        %v311 = vsel %vm295, 1, 0
        %v312 = vsel %vm296, 1, 0
        %v313 = vsel %vm297, 1, 0
        %v314 = vsel %vm298, 1, 0
        %v315 = vsel %vm299, 1, 0
        %v316 = vsel %vm300, 1, 0
        %v317 = vsel %vm301, 1, 0
        %vm318 = vcmp.eq.s32.totalorder %v302, 1
        %vm319 = vcmp.eq.s32.totalorder %v303, 1
        %vm320 = vcmp.eq.s32.totalorder %v304, 1
        %vm321 = vcmp.eq.s32.totalorder %v305, 1
        %vm322 = vcmp.eq.s32.totalorder %v306, 1
        %vm323 = vcmp.eq.s32.totalorder %v307, 1
        %vm324 = vcmp.eq.s32.totalorder %v308, 1
        %vm325 = vcmp.eq.s32.totalorder %v309, 1
        %vm326 = vcmp.eq.s32.totalorder %v310, 1
        %vm327 = vcmp.eq.s32.totalorder %v311, 1
        %vm328 = vcmp.eq.s32.totalorder %v312, 1
        %vm329 = vcmp.eq.s32.totalorder %v313, 1
        %vm330 = vcmp.eq.s32.totalorder %v314, 1
        %vm331 = vcmp.eq.s32.totalorder %v315, 1
        %vm332 = vcmp.eq.s32.totalorder %v316, 1
        %vm333 = vcmp.eq.s32.totalorder %v317, 1
        %v334 = vsel %vm318, %v217, 0.0
        %v335 = vsel %vm318, %v218, 0.0
        %v336 = vsel %vm319, %v219, 0.0
        %v337 = vsel %vm319, %v220, 0.0
        %v338 = vsel %vm320, %v221, 0.0
        %v339 = vsel %vm320, %v222, 0.0
        %v340 = vsel %vm321, %v223, 0.0
        %v341 = vsel %vm321, %v224, 0.0
        %v342 = vsel %vm322, %v225, 0.0
        %v343 = vsel %vm322, %v226, 0.0
        %v344 = vsel %vm323, %v227, 0.0
        %v345 = vsel %vm323, %v228, 0.0
        %v346 = vsel %vm324, %v229, 0.0
        %v347 = vsel %vm324, %v230, 0.0
        %v348 = vsel %vm325, %v231, 0.0
        %v349 = vsel %vm325, %v232, 0.0
        %v350 = vsel %vm326, %v233, 0.0
        %v351 = vsel %vm326, %v234, 0.0
        %v352 = vsel %vm327, %v235, 0.0
        %v353 = vsel %vm327, %v236, 0.0
        %v354 = vsel %vm328, %v237, 0.0
        %v355 = vsel %vm328, %v238, 0.0
        %v356 = vsel %vm329, %v239, 0.0
        %v357 = vsel %vm329, %v240, 0.0
        %v358 = vsel %vm330, %v241, 0.0
        %v359 = vsel %vm330, %v242, 0.0
        %v360 = vsel %vm331, %v243, 0.0
        %v361 = vsel %vm331, %v244, 0.0
        %v362 = vsel %vm332, %v245, 0.0
        %v363 = vsel %vm332, %v246, 0.0
        %v364 = vsel %vm333, %v247, 0.0
        %v365 = vsel %vm333, %v248, 0.0
        %v366 = vld [vmem:[%s186] sm:$0x1]
        %v367 = vlaneseq
        %v368 = vshrl.u32 %v367, 7
        %v369 = vsub.s32 0, %v368
        %v370 = vrot.slane %v366, %v369
        %vm371 = vcmp.eq.s32.totalorder %v251, %v370
        %v372 = vsel %vm371, 1, 0
        %v373 = vcvt.s32.f32 %v372
        %v374 = vld [vmem:[#allocation4] sm:$0xff]
        %v375 = vld [vmem:[#allocation4 + $0x8] sm:$0xff]
        %376 = vmatprep.subr.mxu0 %v365
        %377 = vmatpush1.msra.mxu0 %v364
        %378 = vmatprep.subr.mxu0 %v363
        %379 = vmatpush1.msra.mxu0 %v362
        %380 = vmatprep.subr.mxu0 %v361
        %381 = vmatpush1.msra.mxu0 %v360
        %382 = vmatprep.subr.mxu0 %v359
        %383 = vmatpush1.msra.mxu0 %v358
        %384 = vmatprep.subr.mxu0 %v357
        %385 = vmatpush1.msra.mxu0 %v356
        %386 = vmatprep.subr.mxu0 %v355
        %387 = vmatpush1.msra.mxu0 %v354
        %388 = vmatprep.subr.mxu0 %v353
        %389 = vmatpush1.msra.mxu0 %v352
        %390 = vmatprep.subr.mxu0 %v351
        %391 = vmatpush1.msra.mxu0 %v350
        %392 = vmatprep.subr.mxu0 %v349
        %393 = vmatpush1.msra.mxu0 %v348
        %394 = vmatprep.subr.mxu0 %v347
        %395 = vmatpush1.msra.mxu0 %v346
        %396 = vmatprep.subr.mxu0 %v345
        %397 = vmatpush1.msra.mxu0 %v344
        %398 = vmatprep.subr.mxu0 %v343
        %399 = vmatpush1.msra.mxu0 %v342
        %400 = vmatprep.subr.mxu0 %v341
        %401 = vmatpush1.msra.mxu0 %v340
        %402 = vmatprep.subr.mxu0 %v339
        %403 = vmatpush1.msra.mxu0 %v338
        %404 = vmatprep.subr.mxu0 %v337
        %405 = vmatpush1.msra.mxu0 %v336
        %406 = vmatprep.subr.mxu0 %v335
        %407 = vmatpush1.msra.mxu0 %v334
        %408 = vmatprep.subr.mxu0 0.0
        %409 = vmatpush2.msra.mxu0 0.0
        %410 = vmatprep.subr.mxu0 0.0
        %411 = vmatpush2.msra.mxu0 0.0
        %412 = vmatprep.subr.mxu0 0.0
        %413 = vmatpush2.msra.mxu0 0.0
        %414 = vmatprep.subr.mxu0 0.0
        %415 = vmatpush2.msra.mxu0 0.0
        %416 = vmatprep.subr.mxu0 0.0
        %417 = vmatpush2.msra.mxu0 0.0
        %418 = vmatprep.subr.mxu0 0.0
        %419 = vmatpush2.msra.mxu0 0.0
        %420 = vmatprep.subr.mxu0 0.0
        %421 = vmatpush2.msra.mxu0 0.0
        %422 = vmatprep.subr.mxu0 0.0
        %423 = vmatpush2.msra.mxu0 0.0
        %424 = vmatprep.subr.mxu0 0.0
        %425 = vmatpush2.msra.mxu0 0.0
        %426 = vmatprep.subr.mxu0 0.0
        %427 = vmatpush2.msra.mxu0 0.0
        %428 = vmatprep.subr.mxu0 0.0
        %429 = vmatpush2.msra.mxu0 0.0
        %430 = vmatprep.subr.mxu0 0.0
        %431 = vmatpush2.msra.mxu0 0.0
        %432 = vmatprep.subr.mxu0 0.0
        %433 = vmatpush2.msra.mxu0 0.0
        %434 = vmatprep.subr.mxu0 0.0
        %435 = vmatpush2.msra.mxu0 0.0
        %436 = vmatprep.subr.mxu0 0.0
        %437 = vmatpush2.msra.mxu0 0.0
        %438 = vmatprep.subr.mxu0 0.0
        %439 = vmatpush2.msra.mxu0 0.0
        %440 = vmatprep.mubr.f32.mxu0 0.0
        %441 = vmatmul.mubr.f32.gmra.mxu0 %v373
        %v442 = vpop.f32.mrf.mxu0
        %v443 = vadd.f32 0.0, %v442
        %v444 = vpop.f32.mrf.mxu0
        %v445 = vadd.f32 0.0, %v444
        %446 = vdwg.mxu0
        %v447 = vadd.f32 %v374, %v443
        %v448 = vadd.f32 %v375, %v445
        %449 = vst [vmem:[#allocation4] sm:$0xff] %v447
        %vm450 = vcmask 261120
        %451 = vst.msk [vmem:[#allocation4 + $0x8] sm:$0xff] %vm450, %v448
        // Predicated region
        $region33: #{tpu_custom_call.1} parent=27 // pred_check
          %p452 = pneg %p100
        $region34: #{tpu_custom_call.1} parent=27 // pred_check_branch
          %454 = sbr.rel (%p452) target = $region36
        $region35: #{tpu_custom_call.1} parent=27 // pred_region
          %s455 = smul.u32 2, %s20
          %s457 = ssub.s32 256, 256
          %458 = vsyncadd [#allocation5], %s457
          %s459 = smul.addr %s455, 128
          %s460 = scalar_lea.hbm %s3, %s459
          %s462 = sshll.u32 [#allocation4], 4
          %s463 = int_to_ptr.vmem [resolvable:$true] %s462
          %465 = dma.vmem_to_hbm [thread:$0]  %s463, 256, %s460, [#allocation5]
        $region36: #{tpu_custom_call.1} parent=27 // pred_fallthru
          _
        // Predicated region
        $region37: #{tpu_custom_call.1} parent=27 // pred_check
          %p466 = pneg %p100
        $region38: #{tpu_custom_call.1} parent=27 // pred_check_branch
          %468 = sbr.rel (%p466) target = $region40
        $region39: #{tpu_custom_call.1} parent=27 // pred_region
          %469 = dma.done [#allocation5], 256
        $region40: #{tpu_custom_call.1} parent=27 // pred_fallthru
          _
      $region28: #{tpu_custom_call.1} parent=5 // pred_fallthru
        _
      %p470 = scmp.le.s32.totalorder 2, %s11
      // Predicated region
      $region41: #{tpu_custom_call.1} parent=5 // pred_check
        %p471 = pneg %p470
      $region42: #{tpu_custom_call.1} parent=5 // pred_check_branch
        %473 = sbr.rel (%p471) target = $region44
      $region43: #{tpu_custom_call.1} parent=5 // pred_region
        %s474 = ssub.s32 %s11, 2
      $region44: #{tpu_custom_call.1} parent=5 // pred_fallthru
        _
    $region6: #{tpu_custom_call.1} parent=1 // loop_footer
      %s15 = sadd.s32 1, %s11
    $region7: #{tpu_custom_call.1} parent=1 // loop_footer_branch
      %10 = sbr.rel target = $region3
    $region8: #{tpu_custom_call.1} parent=1 // loop_exit
      _
    %475 = vsyncpa [#allocation5], 1
    %s476 = scalar_lea.sflag [#allocation5], 1
    %477 = vsyncpa %s476, 1

</llo_original>
